<compile_context>
chip_gen: v6e
topology: v6e:2x2x1
jax: 0.10.0
libtpu: 0.0.40
codegen_flags: <defaults>
</compile_context>

<pallas_src>
import functools

import jax
import jax.numpy as jnp
from jax.experimental import pallas as pl
from jax.experimental.pallas import tpu as pltpu


def _round_up(x, m):
    return (x + m - 1) // m * m


def reward_mlp_kernel(states_ref, act_ref, ppack_ref, o_ref, *,
                      state_dim, action_dim, hidden_dim):
    # states_ref: [TB, state_dim] f32      act_ref: [TB, 1] int32
    # ppack_ref:  [R, H] f32  rows = [W1_state(pad8); W1_action(pad8); W2; b1; b2; b3; w3^T; pad]
    # o_ref:      [1, TB] f32  (batch on the lane axis -> lane-dense stores)
    tb = states_ref.shape[0]
    s8 = _round_up(state_dim, 8)
    a8 = _round_up(action_dim, 8)
    H = hidden_dim

    ppack = ppack_ref[...]
    w1_state = ppack[:state_dim, :]                      # [state_dim, H]
    w1_act = ppack[s8:s8 + a8, :]                        # [a8, H]        (sublane-aligned)
    w2 = ppack[s8 + a8:s8 + a8 + H, :]                   # [H, H]         (sublane-aligned)
    vb = s8 + a8 + H                                     # bias base row (multiple of 8)
    b1 = ppack[vb:vb + 1, :]                             # [1, H]
    b2 = ppack[vb + 1:vb + 2, :]                         # [1, H]
    b3 = ppack[vb + 2:vb + 3, 0:1]                       # [1, 1]
    w3_row = ppack[vb + 3:vb + 4, :]                     # [1, H]

    # In-kernel one-hot (VPU iota compare) over the padded action width; the extra
    # columns are never hit (actions < action_dim) and their weight rows are zero.
    acts = act_ref[...]                                                   # [TB, 1] int32
    onehot = (acts == jax.lax.broadcasted_iota(jnp.int32, (tb, a8), 1)
              ).astype(jnp.float32)                                       # [TB, a8]

    # Layer 1: split matmul == concat([states, onehot]) @ W1
    h = jnp.dot(states_ref[...], w1_state, preferred_element_type=jnp.float32)
    h = h + jnp.dot(onehot, w1_act, preferred_element_type=jnp.float32) + b1
    h = jnp.maximum(h, 0.0)
    # Layer 2
    h = jnp.dot(h, w2, preferred_element_type=jnp.float32) + b2
    h = jnp.maximum(h, 0.0)
    # Output layer, transposed: (1,H) x (TB,H)^T -> (1,TB) so the result/store is lane-dense.
    r = jax.lax.dot_general(w3_row, h,
                            dimension_numbers=(((1,), (1,)), ((), ())),
                            preferred_element_type=jnp.float32)
    o_ref[...] = r + b3


def pack_params(params, action_dim):
    """Pack (w1,b1,w2,b2,w3,b3) into one contiguous sublane-aligned buffer.

    Call once per parameter update; reuse across forward calls.
    Returns (ppack, state_dim, action_dim, hidden_dim).
    """
    w1, b1, w2, b2, w3, b3 = params
    d_in, H = w1.shape
    state_dim = d_in - action_dim
    s8 = _round_up(state_dim, 8)
    a8 = _round_up(action_dim, 8)

    w1_state = jnp.zeros((s8, H), jnp.float32).at[:state_dim].set(w1[:state_dim])
    w1_act = jnp.zeros((a8, H), jnp.float32).at[:action_dim].set(w1[state_dim:])
    rows = jnp.concatenate([
        w1_state,
        w1_act,
        w2.astype(jnp.float32),
        jnp.reshape(b1, (1, H)).astype(jnp.float32),
        jnp.reshape(b2, (1, H)).astype(jnp.float32),
        jnp.broadcast_to(jnp.reshape(b3, (1, 1)).astype(jnp.float32), (1, H)),
        jnp.reshape(w3, (1, H)).astype(jnp.float32),   # w3 is [H, 1] -> row vector
    ], axis=0)
    total = s8 + a8 + H + 4
    R = _round_up(total, 8)
    if R != total:
        rows = jnp.pad(rows, ((0, R - total), (0, 0)))
    return rows, state_dim, action_dim, H


def reward_model_forward(states, actions, packed):
    """states: [B, state_dim] f32; actions: [B] or [B,1] int -> rewards [B] f32."""
    ppack, state_dim, action_dim, hidden_dim = packed
    if actions.ndim == 2:
        actions = actions[:, 0]
    actions = actions.astype(jnp.int32)
    states = states.astype(jnp.float32)

    B, sd = states.shape
    assert sd == state_dim, (sd, state_dim)

    # Batch tile: multiple of 8 (sublanes); multiple of 128 (output lanes) whenever
    # there is more than one tile. Cap keeps VMEM use tiny even on v7x (64 MiB).
    TB_MAX = 1024
    b8 = _round_up(B, 8)
    if b8 <= TB_MAX:
        tb, b_pad = b8, b8
    else:
        tb = TB_MAX
        b_pad = _round_up(B, tb)
    num_tiles = b_pad // tb

    if b_pad != B:
        states = jnp.pad(states, ((0, b_pad - B), (0, 0)))
        actions = jnp.pad(actions, (0, b_pad - B))
    actions_2d = actions.reshape(b_pad, 1)

    kernel = functools.partial(reward_mlp_kernel, state_dim=state_dim,
                               action_dim=action_dim, hidden_dim=hidden_dim)
    out = pl.pallas_call(
        kernel,
        out_shape=jax.ShapeDtypeStruct((1, b_pad), jnp.float32),
        grid=(num_tiles,),
        in_specs=[
            pl.BlockSpec((tb, state_dim), lambda i: (i, 0)),   # streamed per batch tile
            pl.BlockSpec((tb, 1), lambda i: (i, 0)),           # streamed per batch tile
            pl.BlockSpec(ppack.shape, lambda i: (0, 0)),       # VMEM-resident packed params
        ],
        out_specs=pl.BlockSpec((1, tb), lambda i: (0, i)),     # lane-dense output
        compiler_params=pltpu.CompilerParams(
            dimension_semantics=("parallel",)),                # pipelining; 2-TC shard on v7x
    )(states, actions_2d, ppack)
    return out[0, :B]


def init_params(key, state_dim, action_dim, hidden_dim):
    """Deterministic PyTorch-style uniform(-1/sqrt(fan_in), 1/sqrt(fan_in)) init."""
    d_in = state_dim + action_dim
    ks = jax.random.split(key, 6)

    def lin(kw, kb, fan_in, fan_out):
        bound = 1.0 / jnp.sqrt(jnp.float32(fan_in))
        w = jax.random.uniform(kw, (fan_in, fan_out), jnp.float32, -bound, bound)
        b = jax.random.uniform(kb, (1, fan_out), jnp.float32, -bound, bound)
        return w, b

    w1, b1 = lin(ks[0], ks[1], d_in, hidden_dim)
    w2, b2 = lin(ks[2], ks[3], hidden_dim, hidden_dim)
    w3, b3 = lin(ks[4], ks[5], hidden_dim, 1)
    return (w1, b1, w2, b2, w3, b3)


def reference_forward(states, actions, params, action_dim):
    """Plain-JAX reference of the PyTorch forward, for correctness checking."""
    if actions.ndim == 1:
        actions = actions[:, None]
    onehot = jax.nn.one_hot(actions[:, 0].astype(jnp.int32), action_dim, dtype=jnp.float32)
    x = jnp.concatenate([states.astype(jnp.float32), onehot], axis=-1)
    w1, b1, w2, b2, w3, b3 = params
    h = jax.nn.relu(x @ w1 + b1)
    h = jax.nn.relu(h @ w2 + b2)
    return (h @ w3 + b3)[:, 0]


if __name__ == "__main__":
    # Small shapes consistent with the module: B=8, state_dim=12, action_dim=4, hidden=64 (default).
    B, STATE_DIM, ACTION_DIM, HIDDEN = 8, 12, 4, 64

    key = jax.random.PRNGKey(0)
    k_params, k_states, k_actions = jax.random.split(key, 3)

    params = init_params(k_params, STATE_DIM, ACTION_DIM, HIDDEN)
    packed = pack_params(params, ACTION_DIM)   # one-time packing, amortized across RL-loop calls
    states = jax.random.normal(k_states, (B, STATE_DIM), jnp.float32)
    actions = jax.random.randint(k_actions, (B,), 0, ACTION_DIM)

    rewards = reward_model_forward(states, actions, packed)
    rewards = jax.block_until_ready(rewards)

    ref = reference_forward(states, actions, params, ACTION_DIM)
    assert rewards.shape == (B,), rewards.shape
    assert jnp.allclose(rewards, ref, atol=1e-4, rtol=1e-4), (rewards, ref)

    print("KERNEL_OK")
</pallas_src>

<mosaic_0001>
module attributes {stable_mosaic.version = 11 : i64} {
  func.func @reward_mlp_kernel(%arg0: i32, %arg1: memref<8x12xf32, #tpu.memory_space<vmem>>, %arg2: memref<8x1xi32, #tpu.memory_space<vmem>>, %arg3: memref<96x64xf32, #tpu.memory_space<vmem>>, %arg4: memref<1x8xf32, #tpu.memory_space<vmem>>) attributes {dimension_semantics = [#tpu.dimension_semantics<parallel>], iteration_bounds = array<i64: 1>, scalar_prefetch = 0 : i64, scratch_operands = 0 : i64, tpu.core_type = #tpu.core_type<tc>, window_params = [{transform_indices = @transform_0, window_bounds = array<i64: 8, 12>}, {transform_indices = @transform_1, window_bounds = array<i64: 8, 1>}, {pipeline_mode = #tpu.pipeline_mode<synchronous>, transform_indices = @transform_2, window_bounds = array<i64: 96, 64>}, {transform_indices = @transform_3, window_bounds = array<i64: 1, 8>}]} {
    %c0 = arith.constant 0 : index
    %c0_0 = arith.constant 0 : index
    %0 = vector.load %arg3[%c0, %c0_0] : memref<96x64xf32, #tpu.memory_space<vmem>>, vector<96x64xf32>
    %1 = vector.extract_strided_slice %0 {offsets = [0, 0], sizes = [12, 64], strides = [1, 1]} : vector<96x64xf32> to vector<12x64xf32>
    %2 = vector.extract_strided_slice %0 {offsets = [16, 0], sizes = [8, 64], strides = [1, 1]} : vector<96x64xf32> to vector<8x64xf32>
    %3 = vector.extract_strided_slice %0 {offsets = [24, 0], sizes = [64, 64], strides = [1, 1]} : vector<96x64xf32> to vector<64x64xf32>
    %4 = vector.extract_strided_slice %0 {offsets = [88, 0], sizes = [1, 64], strides = [1, 1]} : vector<96x64xf32> to vector<1x64xf32>
    %5 = vector.extract_strided_slice %0 {offsets = [89, 0], sizes = [1, 64], strides = [1, 1]} : vector<96x64xf32> to vector<1x64xf32>
    %6 = vector.extract_strided_slice %0 {offsets = [90, 0], sizes = [1, 1], strides = [1, 1]} : vector<96x64xf32> to vector<1x1xf32>
    %7 = vector.extract_strided_slice %0 {offsets = [91, 0], sizes = [1, 64], strides = [1, 1]} : vector<96x64xf32> to vector<1x64xf32>
    %c0_1 = arith.constant 0 : index
    %c0_2 = arith.constant 0 : index
    %8 = vector.load %arg2[%c0_1, %c0_2] : memref<8x1xi32, #tpu.memory_space<vmem>>, vector<8x1xi32>
    %9 = tpu.iota {dimensions = array<i32: 1>} : vector<8x8xi32>
    %10 = vector.broadcast %8 : vector<8x1xi32> to vector<8x8xi32>
    %11 = arith.cmpi eq, %10, %9 : vector<8x8xi32>
    %12 = arith.extui %11 : vector<8x8xi1> to vector<8x8xi32>
    %13 = arith.sitofp %12 : vector<8x8xi32> to vector<8x8xf32>
    %c0_3 = arith.constant 0 : index
    %c0_4 = arith.constant 0 : index
    %14 = vector.load %arg1[%c0_3, %c0_4] : memref<8x12xf32, #tpu.memory_space<vmem>>, vector<8x12xf32>
    %cst = arith.constant dense<0.000000e+00> : vector<8x64xf32>
    %15 = tpu.matmul %14, %1, %cst {dimension_numbers = #tpu.dot_dimension_numbers<[1], [0], [0], [1], [0, 0, 1, 1], [], []>} : vector<8x12xf32>, vector<12x64xf32>, vector<8x64xf32> -> vector<8x64xf32>
    %cst_5 = arith.constant dense<0.000000e+00> : vector<8x64xf32>
    %16 = tpu.matmul %13, %2, %cst_5 {dimension_numbers = #tpu.dot_dimension_numbers<[1], [0], [0], [1], [0, 0, 1, 1], [], []>} : vector<8x8xf32>, vector<8x64xf32>, vector<8x64xf32> -> vector<8x64xf32>
    %17 = arith.addf %15, %16 : vector<8x64xf32>
    %18 = vector.broadcast %4 : vector<1x64xf32> to vector<8x64xf32>
    %19 = arith.addf %17, %18 : vector<8x64xf32>
    %cst_6 = arith.constant 0.000000e+00 : f32
    %20 = vector.broadcast %cst_6 : f32 to vector<8x64xf32>
    %21 = arith.maximumf %19, %20 : vector<8x64xf32>
    %cst_7 = arith.constant dense<0.000000e+00> : vector<8x64xf32>
    %22 = tpu.matmul %21, %3, %cst_7 {dimension_numbers = #tpu.dot_dimension_numbers<[1], [0], [0], [1], [0, 0, 1, 1], [], []>} : vector<8x64xf32>, vector<64x64xf32>, vector<8x64xf32> -> vector<8x64xf32>
    %23 = vector.broadcast %5 : vector<1x64xf32> to vector<8x64xf32>
    %24 = arith.addf %22, %23 : vector<8x64xf32>
    %cst_8 = arith.constant 0.000000e+00 : f32
    %25 = vector.broadcast %cst_8 : f32 to vector<8x64xf32>
    %26 = arith.maximumf %24, %25 : vector<8x64xf32>
    %cst_9 = arith.constant dense<0.000000e+00> : vector<1x8xf32>
    %27 = tpu.matmul %7, %26, %cst_9 {dimension_numbers = #tpu.dot_dimension_numbers<[1], [1], [0], [0], [0, 0, 1, 0], [], []>} : vector<1x64xf32>, vector<8x64xf32>, vector<1x8xf32> -> vector<1x8xf32>
    %28 = vector.broadcast %6 : vector<1x1xf32> to vector<1x8xf32>
    %29 = arith.addf %27, %28 : vector<1x8xf32>
    %c0_10 = arith.constant 0 : index
    %c0_11 = arith.constant 0 : index
    %30 = vector.load %arg4[%c0_10, %c0_11] : memref<1x8xf32, #tpu.memory_space<vmem>>, vector<1x8xf32>
    tpu.vector_store %arg4[%c0_10, %c0_11], %29 {strides = array<i32>} : memref<1x8xf32, #tpu.memory_space<vmem>>, vector<1x8xf32>,
    return
  }
  func.func @transform_0(%arg0: i32) -> (i32, i32) {
    %c0_i32 = arith.constant 0 : i32
    %c0_i32_0 = arith.constant 0 : i32
    return %arg0, %c0_i32 : i32, i32
  }
  func.func @transform_1(%arg0: i32) -> (i32, i32) {
    %c0_i32 = arith.constant 0 : i32
    %c0_i32_0 = arith.constant 0 : i32
    return %arg0, %c0_i32 : i32, i32
  }
  func.func @transform_2(%arg0: i32) -> (i32, i32) {
    %c0_i32 = arith.constant 0 : i32
    %c0_i32_0 = arith.constant 0 : i32
    %c0_i32_1 = arith.constant 0 : i32
    return %c0_i32, %c0_i32_0 : i32, i32
  }
  func.func @transform_3(%arg0: i32) -> (i32, i32) {
    %c0_i32 = arith.constant 0 : i32
    %c0_i32_0 = arith.constant 0 : i32
    return %c0_i32, %arg0 : i32, i32
  }
}

</mosaic_0001>

<llo_original>
// kernel: tpu_custom_call.1
$region0: #{tpu_custom_call.1}
  #allocation0 [shape = 'u32[]', space=smem, size = 0x4, offset = 0x4, fixed_abs, tag = 'smem constant byte address 0x4 - core index']
  #allocation1 [shape = 'u32[144,128]{1,0:T(1,128)}', space=vmem, size = 0x12000, scoped, tag = 'internal scratch']
  %s0 = inlined_call_operand.vmem [shape: f32[8,12], index: 0, kind: input, shape index: {}]
  %s1 = inlined_call_operand.vmem [shape: s32[8,1], index: 1, kind: input, shape index: {}]
  %s2 = inlined_call_operand.vmem [shape: f32[96,64], index: 2, kind: input, shape index: {}]
  %s3 = inlined_call_operand.hbm [shape: f32[1,8], index: 3, kind: output, shape index: {}]
  %s4 = sld [smem:[#allocation0]]
  $region22: #{tpu_custom_call.1} parent=0
    _
  %s6 = ssub.s32 1, %s4
  %s7 = scalar_select 0, %s6, %s4
  $region1: #{tpu_custom_call.1} parent=0
    #allocation2 [shape = 'u8[512]{0}', space=vmem, size = 0x400, scoped, tag = 'output window, operand 0, single buffered']
    #allocation3 [shape = 's32[1]{0}', space=sflag, size = 0x4, scoped, tag = 'scoped memory for tpu_custom_call.1']
    %8 = vsyncpa [#allocation3], 0
    // Predicated region
    $region2: #{tpu_custom_call.1} parent=1 // pred_check
      _
    $region3: #{tpu_custom_call.1} parent=1 // pred_check_branch
      %10 = sbr.rel (0) target = $region5
    $region4: #{tpu_custom_call.1} parent=1 // pred_region
      _
    $region5: #{tpu_custom_call.1} parent=1 // pred_fallthru
      _
    // Predicated region
    $region6: #{tpu_custom_call.1} parent=1 // pred_check
      _
    $region7: #{tpu_custom_call.1} parent=1 // pred_check_branch
      %12 = sbr.rel (0) target = $region9
    $region8: #{tpu_custom_call.1} parent=1 // pred_region
      _
    $region9: #{tpu_custom_call.1} parent=1 // pred_fallthru
      _
    // Predicated region
    $region10: #{tpu_custom_call.1} parent=1 // pred_check
      _
    $region11: #{tpu_custom_call.1} parent=1 // pred_check_branch
      %14 = sbr.rel (0) target = $region13
    $region12: #{tpu_custom_call.1} parent=1 // pred_region
      _
    $region13: #{tpu_custom_call.1} parent=1 // pred_fallthru
      _
    %v15 = vld [vmem:[%s2] sm:$0xff]
    %v16 = vld [vmem:[%s2 + $0x8] sm:$0xff]
    %v17 = vld [vmem:[%s2 + $0x10] sm:$0xff]
    %v18 = vld [vmem:[%s2 + $0x18] sm:$0xff]
    %v19 = vld [vmem:[%s2 + $0x20] sm:$0xff]
    %v20 = vld [vmem:[%s2 + $0x28] sm:$0xff]
    %v21 = vld [vmem:[%s2 + $0x30] sm:$0xff]
    %v22 = vld [vmem:[%s2 + $0x38] sm:$0xff]
    %v23 = vld [vmem:[%s2 + $0x40] sm:$0xff]
    %v24 = vld [vmem:[%s2 + $0x48] sm:$0xff]
    %v25 = vld [vmem:[%s2 + $0x50] sm:$0xff]
    %v26 = vld [vmem:[%s2 + $0x58] sm:$0xff]
    %v27 = vld [vmem:[%s1] sm:$0xff]
    %v28 = vlaneseq
    %v29 = vand.u32 %v28, 127
    %30 = vset.pattern.permute.xlu0 0
    %31 = vperm.xlu0 %30, %v27
    %v32 = vpop.permute.xlu0 %31
    %vm33 = vcmp.eq.s32.totalorder %v32, %v29
    %v34 = vsel %vm33, 1, 0
    %v35 = vcvt.s32.f32 %v34
    %v36 = vld [vmem:[%s0] sm:$0xff]
    %vm37 = vcmask 64512
    %v39 = vsel %vm37, %v35, 0
    %41 = vmatprep.subr.mxu0 0.0
    %42 = vmatpush1.msra.mxu0 0.0
    %43 = vmatprep.subr.mxu0 0.0
    %44 = vmatpush1.msra.mxu0 0.0
    %45 = vmatprep.subr.mxu0 0.0
    %46 = vmatpush1.msra.mxu0 0.0
    %47 = vmatprep.subr.mxu0 0.0
    %48 = vmatpush1.msra.mxu0 0.0
    %49 = vmatprep.subr.mxu0 0.0
    %50 = vmatpush1.msra.mxu0 0.0
    %51 = vmatprep.subr.mxu0 0.0
    %52 = vmatpush1.msra.mxu0 0.0
    %53 = vmatprep.subr.mxu0 0.0
    %54 = vmatpush1.msra.mxu0 0.0
    %55 = vmatprep.subr.mxu0 0.0
    %56 = vmatpush1.msra.mxu0 0.0
    %57 = vmatprep.subr.mxu0 0.0
    %58 = vmatpush1.msra.mxu0 0.0
    %59 = vmatprep.subr.mxu0 0.0
    %60 = vmatpush1.msra.mxu0 0.0
    %61 = vmatprep.subr.mxu0 0.0
    %62 = vmatpush1.msra.mxu0 0.0
    %63 = vmatprep.subr.mxu0 0.0
    %64 = vmatpush1.msra.mxu0 0.0
    %65 = vmatprep.subr.mxu0 0.0
    %66 = vmatpush1.msra.mxu0 0.0
    %67 = vmatprep.subr.mxu0 0.0
    %68 = vmatpush1.msra.mxu0 0.0
    %69 = vmatprep.subr.mxu0 0.0
    %70 = vmatpush1.msra.mxu0 0.0
    %71 = vmatprep.subr.mxu0 0.0
    %72 = vmatpush1.msra.mxu0 %v17
    %73 = vmatprep.subr.mxu0 0.0
    %74 = vmatpush2.msra.mxu0 0.0
    %75 = vmatprep.subr.mxu0 0.0
    %76 = vmatpush2.msra.mxu0 0.0
    %77 = vmatprep.subr.mxu0 0.0
    %78 = vmatpush2.msra.mxu0 0.0
    %79 = vmatprep.subr.mxu0 0.0
    %80 = vmatpush2.msra.mxu0 0.0
    %81 = vmatprep.subr.mxu0 0.0
    %82 = vmatpush2.msra.mxu0 0.0
    %83 = vmatprep.subr.mxu0 0.0
    %84 = vmatpush2.msra.mxu0 0.0
    %85 = vmatprep.subr.mxu0 0.0
    %86 = vmatpush2.msra.mxu0 0.0
    %87 = vmatprep.subr.mxu0 0.0
    %88 = vmatpush2.msra.mxu0 0.0
    %89 = vmatprep.subr.mxu0 0.0
    %90 = vmatpush2.msra.mxu0 0.0
    %91 = vmatprep.subr.mxu0 0.0
    %92 = vmatpush2.msra.mxu0 0.0
    %93 = vmatprep.subr.mxu0 0.0
    %94 = vmatpush2.msra.mxu0 0.0
    %95 = vmatprep.subr.mxu0 0.0
    %96 = vmatpush2.msra.mxu0 0.0
    %97 = vmatprep.subr.mxu0 0.0
    %98 = vmatpush2.msra.mxu0 0.0
    %99 = vmatprep.subr.mxu0 0.0
    %100 = vmatpush2.msra.mxu0 0.0
    %101 = vmatprep.subr.mxu0 0.0
    %102 = vmatpush2.msra.mxu0 0.0
    %103 = vmatprep.subr.mxu0 0.0
    %104 = vmatpush2.msra.mxu0 0.0
    %105 = vmatprep.mubr.f32.mxu0 0.0
    %106 = vmatmul.mubr.f32.gmra.mxu0 %v39
    %v107 = vpop.f32.mrf.mxu0
    %v108 = vadd.f32 0.0, %v107
    %v109 = vpop.f32.mrf.mxu0
    %110 = vdwg.mxu0
    %vm111 = vcmask 97280
    %v113 = vsel %vm111, %v36, 0
    %vm115 = vcmask 1043456
    %v117 = vsel %vm115, %v16, 0
    %119 = vmatprep.subr.mxu0 0.0
    %120 = vmatpush1.msra.mxu0 0.0
    %121 = vmatprep.subr.mxu0 0.0
    %122 = vmatpush1.msra.mxu0 0.0
    %123 = vmatprep.subr.mxu0 0.0
    %124 = vmatpush1.msra.mxu0 0.0
    %125 = vmatprep.subr.mxu0 0.0
    %126 = vmatpush1.msra.mxu0 0.0
    %127 = vmatprep.subr.mxu0 0.0
    %128 = vmatpush1.msra.mxu0 0.0
    %129 = vmatprep.subr.mxu0 0.0
    %130 = vmatpush1.msra.mxu0 0.0
    %131 = vmatprep.subr.mxu0 0.0
    %132 = vmatpush1.msra.mxu0 0.0
    %133 = vmatprep.subr.mxu0 0.0
    %134 = vmatpush1.msra.mxu0 0.0
    %135 = vmatprep.subr.mxu0 0.0
    %136 = vmatpush1.msra.mxu0 0.0
    %137 = vmatprep.subr.mxu0 0.0
    %138 = vmatpush1.msra.mxu0 0.0
    %139 = vmatprep.subr.mxu0 0.0
    %140 = vmatpush1.msra.mxu0 0.0
    %141 = vmatprep.subr.mxu0 0.0
    %142 = vmatpush1.msra.mxu0 0.0
    %143 = vmatprep.subr.mxu0 0.0
    %144 = vmatpush1.msra.mxu0 0.0
    %145 = vmatprep.subr.mxu0 0.0
    %146 = vmatpush1.msra.mxu0 0.0
    %147 = vmatprep.subr.mxu0 0.0
    %148 = vmatpush1.msra.mxu0 %v117
    %149 = vmatprep.subr.mxu0 0.0
    %150 = vmatpush1.msra.mxu0 %v15
    %151 = vmatprep.subr.mxu0 0.0
    %152 = vmatpush2.msra.mxu0 0.0
    %153 = vmatprep.subr.mxu0 0.0
    %154 = vmatpush2.msra.mxu0 0.0
    %155 = vmatprep.subr.mxu0 0.0
    %156 = vmatpush2.msra.mxu0 0.0
    %157 = vmatprep.subr.mxu0 0.0
    %158 = vmatpush2.msra.mxu0 0.0
    %159 = vmatprep.subr.mxu0 0.0
    %160 = vmatpush2.msra.mxu0 0.0
    %161 = vmatprep.subr.mxu0 0.0
    %162 = vmatpush2.msra.mxu0 0.0
    %163 = vmatprep.subr.mxu0 0.0
    %164 = vmatpush2.msra.mxu0 0.0
    %165 = vmatprep.subr.mxu0 0.0
    %166 = vmatpush2.msra.mxu0 0.0
    %167 = vmatprep.subr.mxu0 0.0
    %168 = vmatpush2.msra.mxu0 0.0
    %169 = vmatprep.subr.mxu0 0.0
    %170 = vmatpush2.msra.mxu0 0.0
    %171 = vmatprep.subr.mxu0 0.0
    %172 = vmatpush2.msra.mxu0 0.0
    %173 = vmatprep.subr.mxu0 0.0
    %174 = vmatpush2.msra.mxu0 0.0
    %175 = vmatprep.subr.mxu0 0.0
    %176 = vmatpush2.msra.mxu0 0.0
    %177 = vmatprep.subr.mxu0 0.0
    %178 = vmatpush2.msra.mxu0 0.0
    %179 = vmatprep.subr.mxu0 0.0
    %180 = vmatpush2.msra.mxu0 0.0
    %181 = vmatprep.subr.mxu0 0.0
    %182 = vmatpush2.msra.mxu0 0.0
    %183 = vmatprep.mubr.f32.mxu0 0.0
    %184 = vmatmul.mubr.f32.gmra.mxu0 %v113
    %v185 = vpop.f32.mrf.mxu0
    %v186 = vadd.f32 %v108, %v185
    %v187 = vpop.f32.mrf.mxu0
    %188 = vdwg.mxu0
    %v189 = vlaneseq
    %v190 = vshrl.u32 %v189, 7
    %v191 = vsub.s32 0, %v190
    %v192 = vrot.slane %v26, %v191
    %v193 = vadd.f32 %v186, %v192
    %v194 = vmax.f32 %v193, 0.0
    %v195 = vlaneseq
    %v196 = vshrl.u32 %v195, 7
    %v197 = vsub.s32 1, %v196
    %v198 = vrot.slane %v26, %v197
    %vm199 = vcmask 523264
    %v201 = vsel %vm199, %v194, 0
    %203 = vmatprep.subr.mxu0 0.0
    %204 = vmatpush1.msra.mxu0 0.0
    %205 = vmatprep.subr.mxu0 0.0
    %206 = vmatpush1.msra.mxu0 0.0
    %207 = vmatprep.subr.mxu0 0.0
    %208 = vmatpush1.msra.mxu0 0.0
    %209 = vmatprep.subr.mxu0 0.0
    %210 = vmatpush1.msra.mxu0 0.0
    %211 = vmatprep.subr.mxu0 0.0
    %212 = vmatpush1.msra.mxu0 0.0
    %213 = vmatprep.subr.mxu0 0.0
    %214 = vmatpush1.msra.mxu0 0.0
    %215 = vmatprep.subr.mxu0 0.0
    %216 = vmatpush1.msra.mxu0 0.0
    %217 = vmatprep.subr.mxu0 0.0
    %218 = vmatpush1.msra.mxu0 0.0
    %219 = vmatprep.subr.mxu0 0.0
    %220 = vmatpush1.msra.mxu0 %v25
    %221 = vmatprep.subr.mxu0 0.0
    %222 = vmatpush1.msra.mxu0 %v24
    %223 = vmatprep.subr.mxu0 0.0
    %224 = vmatpush1.msra.mxu0 %v23
    %225 = vmatprep.subr.mxu0 0.0
    %226 = vmatpush1.msra.mxu0 %v22
    %227 = vmatprep.subr.mxu0 0.0
    %228 = vmatpush1.msra.mxu0 %v21
    %229 = vmatprep.subr.mxu0 0.0
    %230 = vmatpush1.msra.mxu0 %v20
    %231 = vmatprep.subr.mxu0 0.0
    %232 = vmatpush1.msra.mxu0 %v19
    %233 = vmatprep.subr.mxu0 0.0
    %234 = vmatpush1.msra.mxu0 %v18
    %235 = vmatprep.subr.mxu0 0.0
    %236 = vmatpush2.msra.mxu0 0.0
    %237 = vmatprep.subr.mxu0 0.0
    %238 = vmatpush2.msra.mxu0 0.0
    %239 = vmatprep.subr.mxu0 0.0
    %240 = vmatpush2.msra.mxu0 0.0
    %241 = vmatprep.subr.mxu0 0.0
    %242 = vmatpush2.msra.mxu0 0.0
    %243 = vmatprep.subr.mxu0 0.0
    %244 = vmatpush2.msra.mxu0 0.0
    %245 = vmatprep.subr.mxu0 0.0
    %246 = vmatpush2.msra.mxu0 0.0
    %247 = vmatprep.subr.mxu0 0.0
    %248 = vmatpush2.msra.mxu0 0.0
    %249 = vmatprep.subr.mxu0 0.0
    %250 = vmatpush2.msra.mxu0 0.0
    %251 = vmatprep.subr.mxu0 0.0
    %252 = vmatpush2.msra.mxu0 0.0
    %253 = vmatprep.subr.mxu0 0.0
    %254 = vmatpush2.msra.mxu0 0.0
    %255 = vmatprep.subr.mxu0 0.0
    %256 = vmatpush2.msra.mxu0 0.0
    %257 = vmatprep.subr.mxu0 0.0
    %258 = vmatpush2.msra.mxu0 0.0
    %259 = vmatprep.subr.mxu0 0.0
    %260 = vmatpush2.msra.mxu0 0.0
    %261 = vmatprep.subr.mxu0 0.0
    %262 = vmatpush2.msra.mxu0 0.0
    %263 = vmatprep.subr.mxu0 0.0
    %264 = vmatpush2.msra.mxu0 0.0
    %265 = vmatprep.subr.mxu0 0.0
    %266 = vmatpush2.msra.mxu0 0.0
    %267 = vmatprep.mubr.f32.mxu0 0.0
    %268 = vmatmul.mubr.f32.gmra.mxu0 %v201
    %v269 = vpop.f32.mrf.mxu0
    %v270 = vadd.f32 %v198, %v269
    %v271 = vpop.f32.mrf.mxu0
    %272 = vdwg.mxu0
    %v273 = vmax.f32 %v270, 0.0
    %275 = vset.pattern.permute.xlu0 0
    %276 = vperm.xlu0 %275, %v26
    %v277 = vpop.permute.xlu0 %276
    %v278 = vrot.slane %v26, 3
    %v279 = vrot.slane %v277, 2
    %v281 = vsel %vm199, %v278, 0
    %v284 = vsel %vm199, %v273, 0
    %286 = vmatprep.subr.mxu0 0.0
    %287 = vmatpush1.xpose.msra.mxu0 0.0
    %288 = vmatprep.subr.mxu0 0.0
    %289 = vmatpush1.xpose.msra.mxu0 0.0
    %290 = vmatprep.subr.mxu0 0.0
    %291 = vmatpush1.xpose.msra.mxu0 0.0
    %292 = vmatprep.subr.mxu0 0.0
    %293 = vmatpush1.xpose.msra.mxu0 0.0
    %294 = vmatprep.subr.mxu0 0.0
    %295 = vmatpush1.xpose.msra.mxu0 0.0
    %296 = vmatprep.subr.mxu0 0.0
    %297 = vmatpush1.xpose.msra.mxu0 0.0
    %298 = vmatprep.subr.mxu0 0.0
    %299 = vmatpush1.xpose.msra.mxu0 0.0
    %300 = vmatprep.subr.mxu0 0.0
    %301 = vmatpush1.xpose.msra.mxu0 0.0
    %302 = vmatprep.subr.mxu0 0.0
    %303 = vmatpush1.xpose.msra.mxu0 0.0
    %304 = vmatprep.subr.mxu0 0.0
    %305 = vmatpush1.xpose.msra.mxu0 0.0
    %306 = vmatprep.subr.mxu0 0.0
    %307 = vmatpush1.xpose.msra.mxu0 0.0
    %308 = vmatprep.subr.mxu0 0.0
    %309 = vmatpush1.xpose.msra.mxu0 0.0
    %310 = vmatprep.subr.mxu0 0.0
    %311 = vmatpush1.xpose.msra.mxu0 0.0
    %312 = vmatprep.subr.mxu0 0.0
    %313 = vmatpush1.xpose.msra.mxu0 0.0
    %314 = vmatprep.subr.mxu0 0.0
    %315 = vmatpush1.xpose.msra.mxu0 0.0
    %316 = vmatprep.subr.mxu0 0.0
    %317 = vmatpush1.xpose.msra.mxu0 %v284
    %318 = vmatprep.subr.mxu0 0.0
    %319 = vmatpush2.xpose.msra.mxu0 0.0
    %320 = vmatprep.subr.mxu0 0.0
    %321 = vmatpush2.xpose.msra.mxu0 0.0
    %322 = vmatprep.subr.mxu0 0.0
    %323 = vmatpush2.xpose.msra.mxu0 0.0
    %324 = vmatprep.subr.mxu0 0.0
    %325 = vmatpush2.xpose.msra.mxu0 0.0
    %326 = vmatprep.subr.mxu0 0.0
    %327 = vmatpush2.xpose.msra.mxu0 0.0
    %328 = vmatprep.subr.mxu0 0.0
    %329 = vmatpush2.xpose.msra.mxu0 0.0
    %330 = vmatprep.subr.mxu0 0.0
    %331 = vmatpush2.xpose.msra.mxu0 0.0
    %332 = vmatprep.subr.mxu0 0.0
    %333 = vmatpush2.xpose.msra.mxu0 0.0
    %334 = vmatprep.subr.mxu0 0.0
    %335 = vmatpush2.xpose.msra.mxu0 0.0
    %336 = vmatprep.subr.mxu0 0.0
    %337 = vmatpush2.xpose.msra.mxu0 0.0
    %338 = vmatprep.subr.mxu0 0.0
    %339 = vmatpush2.xpose.msra.mxu0 0.0
    %340 = vmatprep.subr.mxu0 0.0
    %341 = vmatpush2.xpose.msra.mxu0 0.0
    %342 = vmatprep.subr.mxu0 0.0
    %343 = vmatpush2.xpose.msra.mxu0 0.0
    %344 = vmatprep.subr.mxu0 0.0
    %345 = vmatpush2.xpose.msra.mxu0 0.0
    %346 = vmatprep.subr.mxu0 0.0
    %347 = vmatpush2.xpose.msra.mxu0 0.0
    %348 = vmatprep.subr.mxu0 0.0
    %349 = vmatpush2.xpose.msra.mxu0 0.0
    %350 = vmatprep.mubr.f32.mxu0 0.0
    %351 = vmatmul.mubr.f32.gmra.mxu0 %v281
    %v352 = vpop.f32.mrf.mxu0
    %v353 = vadd.f32 %v279, %v352
    %v354 = vpop.f32.mrf.mxu0
    %355 = vdwg.mxu0
    %vm356 = vcmask 57344
    %357 = vst.msk [vmem:[#allocation2] sm:$0x1] %vm356, %v353
    // Predicated region
    $region14: #{tpu_custom_call.1} parent=1 // pred_check
      _
    $region15: #{tpu_custom_call.1} parent=1 // pred_check_branch
      %359 = sbr.rel (0) target = $region17
    $region16: #{tpu_custom_call.1} parent=1 // pred_region
      %s361 = ssub.s32 16, 16
      %362 = vsyncadd [#allocation3], %s361
      %s364 = sshll.u32 [#allocation2], 4
      %s365 = int_to_ptr.vmem [resolvable:$true] %s364
      %367 = dma.vmem_to_hbm [thread:$0]  %s365, 16, %s3, [#allocation3]
    $region17: #{tpu_custom_call.1} parent=1 // pred_fallthru
      _
    // Predicated region
    $region18: #{tpu_custom_call.1} parent=1 // pred_check
      _
    $region19: #{tpu_custom_call.1} parent=1 // pred_check_branch
      %369 = sbr.rel (0) target = $region21
    $region20: #{tpu_custom_call.1} parent=1 // pred_region
      %370 = dma.done [#allocation3], 16
    $region21: #{tpu_custom_call.1} parent=1 // pred_fallthru
      _
    %371 = vsyncpa [#allocation3], 1

</llo_original>
